<compile_context>
chip_gen: v5e
topology: v5e:2x2
jax: 0.10.0
libtpu: 0.0.40
codegen_flags: <defaults>
</compile_context>

<pallas_src>
import functools
import math

import jax
import jax.numpy as jnp
from jax.experimental import pallas as pl
from jax.experimental.pallas import tpu as pltpu

_LOG_BASE = math.log(10000.0)


def _pe_kernel_chanlast(x_ref, o_ref, pe_ref, *, d, s_tile):
    """Blocks are (s_tile, d) in (position, channel) layout.

    Grid is (num_seq_tiles, batch) with batch innermost; PE depends only on
    (position, channel), so it is computed once per seq tile (at batch index
    0) into the VMEM scratch `pe_ref` and reused for every batch element.
    """
    s_blk = pl.program_id(0)

    @pl.when(pl.program_id(1) == 0)
    def _():
        row = jax.lax.broadcasted_iota(jnp.float32, (s_tile, 1), 0)
        pos = row + (s_blk * s_tile).astype(jnp.float32)            # (s_tile, 1)
        chan = jax.lax.broadcasted_iota(jnp.int32, (1, d), 1)       # (1, d)
        k = (chan >> 1).astype(jnp.float32)
        inv_freq = jnp.exp(k * jnp.float32(-2.0 * _LOG_BASE / d))   # (1, d)
        angle = pos * inv_freq                                      # (s_tile, d)
        is_even = (chan & 1) == 0
        pe_ref[...] = jnp.where(is_even, jnp.sin(angle), jnp.cos(angle))

    o_ref[...] = (x_ref[...].astype(jnp.float32) + pe_ref[...]).astype(o_ref.dtype)


def _pe_kernel_folded(x_ref, o_ref, pe_ref, *, d, r_tile):
    """Lane-dense path for D < 128 with 128 % D == 0 (D is a power of two).

    The per-batch (S, D) plane is viewed as (rows, 128); flat element index e
    maps to (pos = e >> log2(D), chan = e & (D-1)).  Since 128 % D == 0 the
    channel pattern depends only on the lane index.  PE is cached in the
    scratch and reused across the batch (grid = (num_row_tiles, batch)).
    """
    r_blk = pl.program_id(0)
    shift = d.bit_length() - 1          # d is a power of two here

    @pl.when(pl.program_id(1) == 0)
    def _():
        base = r_blk * (r_tile * 128)
        row = jax.lax.broadcasted_iota(jnp.int32, (r_tile, 128), 0)
        lane = jax.lax.broadcasted_iota(jnp.int32, (r_tile, 128), 1)
        flat = base + row * 128 + lane                              # flat (pos,chan) index
        pos = (flat >> shift).astype(jnp.float32)                   # (r_tile, 128)
        lchan = jax.lax.broadcasted_iota(jnp.int32, (1, 128), 1) & (d - 1)
        k = (lchan >> 1).astype(jnp.float32)
        inv_freq = jnp.exp(k * jnp.float32(-2.0 * _LOG_BASE / d))   # (1, 128)
        angle = pos * inv_freq                                      # (r_tile, 128)
        is_even = (lchan & 1) == 0
        pe_ref[...] = jnp.where(is_even, jnp.sin(angle), jnp.cos(angle))

    o_ref[...] = (x_ref[...].astype(jnp.float32) + pe_ref[...]).astype(o_ref.dtype)


def sincos_position_embedding(x: jax.Array, *, seq_tile_cap: int = 2048,
                              row_tile_cap: int = 2048,
                              vmem_budget_bytes: int = 8 * 1024 * 1024) -> jax.Array:
    """x: (B, S, D) -> (B, S, D), x + sinusoidal PE (PyTorch-equivalent)."""
    B, S, D = x.shape
    assert D % 2 == 0, "v_dim must be even (same implicit requirement as PyTorch)"

    itemsize = jnp.dtype(x.dtype).itemsize
    cost = pl.CostEstimate(flops=2 * B * S * D,
                           transcendentals=2 * S * D,          # PE cached across batch
                           bytes_accessed=2 * B * S * D * itemsize)

    use_folded = (D % 128 != 0) and (128 % D == 0) and ((S * D) % 128 == 0)

    if use_folded:
        rows = (S * D) // 128
        r_cap = max(8, (row_tile_cap // 8) * 8)
        r_tile = rows if rows <= r_cap else r_cap
        tile_bytes = r_tile * 128 * max(itemsize, 4)
        vmem_limit = min(100 * 1024 * 1024, max(4 * 1024 * 1024, 6 * tile_bytes))
        kernel = functools.partial(_pe_kernel_folded, d=D, r_tile=r_tile)
        x_folded = x.reshape(B, rows, 128)
        out = pl.pallas_call(
            kernel,
            out_shape=jax.ShapeDtypeStruct((B, rows, 128), x.dtype),
            grid_spec=pltpu.PrefetchScalarGridSpec(
                num_scalar_prefetch=0,
                grid=(pl.cdiv(rows, r_tile), B),
                in_specs=[pl.BlockSpec((pl.Squeezed(), r_tile, 128),
                                       lambda r, b: (b, r, 0))],
                out_specs=pl.BlockSpec((pl.Squeezed(), r_tile, 128),
                                       lambda r, b: (b, r, 0)),
                scratch_shapes=[pltpu.VMEM((r_tile, 128), jnp.float32)],
            ),
            compiler_params=pltpu.CompilerParams(
                dimension_semantics=("parallel", "arbitrary"),
                vmem_limit_bytes=vmem_limit),
            cost_estimate=cost,
        )(x_folded)
        return out.reshape(B, S, D)

    # Standard channel-last path (lane-dense when D % 128 == 0).
    # TODO(synk): lane-dense folding for D that neither divides nor is a
    # multiple of 128 (needs vector int div/mod by a non-power-of-2 constant);
    # such shapes currently use this path with a sub-128 last dim.
    s_tile = min(S,
                 max(8, (seq_tile_cap // 8) * 8),
                 max(8, vmem_budget_bytes // (20 * D)))   # 2 in + 2 out bufs + scratch
    if s_tile < S and s_tile % 8 != 0:
        s_tile = max(8, (s_tile // 8) * 8)
    if s_tile >= S:
        s_tile = S
    tile_bytes = s_tile * D * max(itemsize, 4)
    vmem_limit = min(100 * 1024 * 1024, max(4 * 1024 * 1024, 6 * tile_bytes))
    kernel = functools.partial(_pe_kernel_chanlast, d=D, s_tile=s_tile)
    return pl.pallas_call(
        kernel,
        out_shape=jax.ShapeDtypeStruct((B, S, D), x.dtype),
        grid_spec=pltpu.PrefetchScalarGridSpec(
            num_scalar_prefetch=0,
            grid=(pl.cdiv(S, s_tile), B),
            in_specs=[pl.BlockSpec((pl.Squeezed(), s_tile, D),
                                   lambda s, b: (b, s, 0))],
            out_specs=pl.BlockSpec((pl.Squeezed(), s_tile, D),
                                   lambda s, b: (b, s, 0)),
            scratch_shapes=[pltpu.VMEM((s_tile, D), jnp.float32)],
        ),
        compiler_params=pltpu.CompilerParams(
            dimension_semantics=("parallel", "arbitrary"),
            vmem_limit_bytes=vmem_limit),
        cost_estimate=cost,
    )(x)


def _reference(x: jax.Array) -> jax.Array:
    # Pure-JAX reference mirroring the PyTorch forward exactly.
    B, S, D = x.shape
    position_ids = jnp.arange(S, dtype=jnp.float32)[None, :]
    position_ids = jnp.broadcast_to(position_ids, (B, S))
    div_term = jnp.exp(jnp.arange(0, D, 2, dtype=jnp.float32)
                       * -(math.log(10000.0) / D))
    angles = position_ids[..., None] * div_term[None, None, :]
    pe = jnp.zeros((B, S, D), dtype=jnp.float32)
    pe = pe.at[:, :, 0::2].set(jnp.sin(angles))
    pe = pe.at[:, :, 1::2].set(jnp.cos(angles))
    return x + pe


if __name__ == "__main__":
    key = jax.random.PRNGKey(0)
    k1, k2, k3, k4 = jax.random.split(key, 4)

    # Primary shapes implied by the module: (batch, seq_len, v_dim), D < 128
    # -> exercises the lane-dense folded path with batch-reused PE scratch.
    B, S, D = 2, 8, 32
    x = jax.random.normal(k1, (B, S, D), dtype=jnp.float32)
    out = jax.block_until_ready(sincos_position_embedding(x))
    ref = _reference(x)
    assert out.shape == (B, S, D)
    assert jnp.allclose(out, ref, atol=1e-5, rtol=1e-5), "mismatch (folded path)"

    # Lane-aligned channel-last path (D multiple of 128).
    x2 = jax.random.normal(k2, (2, 16, 128), dtype=jnp.float32)
    out2 = jax.block_until_ready(sincos_position_embedding(x2))
    assert jnp.allclose(out2, _reference(x2), atol=1e-5, rtol=1e-5), \
        "mismatch (chanlast path)"

    # Fallback channel-last path (D neither divides nor is a multiple of 128).
    x3 = jax.random.normal(k3, (2, 8, 96), dtype=jnp.float32)
    out3 = jax.block_until_ready(sincos_position_embedding(x3))
    assert jnp.allclose(out3, _reference(x3), atol=1e-5, rtol=1e-5), \
        "mismatch (fallback path)"

    # Multi-tile folded path: exercises PE-scratch recompute per seq tile
    # and reuse across the inner batch axis (grid = (2, 2)).
    x4 = jax.random.normal(k4, (2, 64, 32), dtype=jnp.float32)
    out4 = jax.block_until_ready(sincos_position_embedding(x4, row_tile_cap=8))
    assert jnp.allclose(out4, _reference(x4), atol=1e-5, rtol=1e-5), \
        "mismatch (multi-tile folded path)"

    print("KERNEL_OK")
</pallas_src>

<mosaic_0001>
module attributes {stable_mosaic.version = 11 : i64} {
  func.func @_pe_kernel_folded(%arg0: i32, %arg1: i32, %arg2: memref<1x2x128xf32, #tpu.memory_space<vmem>>, %arg3: memref<1x2x128xf32, #tpu.memory_space<vmem>>, %arg4: memref<2x128xf32, #tpu.memory_space<vmem>>) attributes {dimension_semantics = [#tpu.dimension_semantics<parallel>, #tpu.dimension_semantics<arbitrary>], iteration_bounds = array<i64: 1, 2>, scalar_prefetch = 0 : i64, scratch_operands = 1 : i64, tpu.core_type = #tpu.core_type<tc>, window_params = [{transform_indices = @transform_0, window_bounds = array<i64: 1, 2, 128>}, {transform_indices = @transform_1, window_bounds = array<i64: 1, 2, 128>}]} {
    %c0_i32 = arith.constant 0 : i32
    %0 = arith.cmpi eq, %arg1, %c0_i32 : i32
    %1 = arith.extui %0 : i1 to i32
    %c0_i32_0 = arith.constant 0 : i32
    %2 = arith.cmpi ne, %1, %c0_i32_0 : i32
    scf.if %2 {
      %c256_i32 = arith.constant 256 : i32
      %10 = arith.muli %arg0, %c256_i32 : i32
      %11 = tpu.iota {dimensions = array<i32: 0>} : vector<2x128xi32>
      %12 = tpu.iota {dimensions = array<i32: 1>} : vector<2x128xi32>
      %c128_i32 = arith.constant 128 : i32
      %13 = vector.broadcast %c128_i32 : i32 to vector<2x128xi32>
      %14 = arith.muli %11, %13 : vector<2x128xi32>
      %15 = vector.broadcast %10 : i32 to vector<2x128xi32>
      %16 = arith.addi %15, %14 : vector<2x128xi32>
      %17 = arith.addi %16, %12 : vector<2x128xi32>
      %c5_i32 = arith.constant 5 : i32
      %18 = vector.broadcast %c5_i32 : i32 to vector<2x128xi32>
      %19 = arith.shrsi %17, %18 : vector<2x128xi32>
      %20 = arith.sitofp %19 : vector<2x128xi32> to vector<2x128xf32>
      %21 = tpu.iota {dimensions = array<i32: 1>} : vector<1x128xi32>
      %c31_i32 = arith.constant 31 : i32
      %22 = vector.broadcast %c31_i32 : i32 to vector<1x128xi32>
      %23 = arith.andi %21, %22 : vector<1x128xi32>
      %c1_i32 = arith.constant 1 : i32
      %24 = vector.broadcast %c1_i32 : i32 to vector<1x128xi32>
      %25 = arith.shrsi %23, %24 : vector<1x128xi32>
      %26 = arith.sitofp %25 : vector<1x128xi32> to vector<1x128xf32>
      %cst = arith.constant -0.575646281 : f32
      %27 = vector.broadcast %cst : f32 to vector<1x128xf32>
      %28 = arith.mulf %26, %27 : vector<1x128xf32>
      %29 = math.exp %28 : vector<1x128xf32>
      %30 = vector.broadcast %29 : vector<1x128xf32> to vector<2x128xf32>
      %31 = arith.mulf %20, %30 : vector<2x128xf32>
      %c1_i32_8 = arith.constant 1 : i32
      %32 = vector.broadcast %c1_i32_8 : i32 to vector<1x128xi32>
      %33 = arith.andi %23, %32 : vector<1x128xi32>
      %c0_i32_9 = arith.constant 0 : i32
      %34 = vector.broadcast %c0_i32_9 : i32 to vector<1x128xi32>
      %35 = arith.cmpi eq, %33, %34 : vector<1x128xi32>
      %36 = math.sin %31 : vector<2x128xf32>
      %37 = math.cos %31 : vector<2x128xf32>
      %38 = vector.shape_cast %35 : vector<1x128xi1> to vector<1x128xi1>
      %39 = vector.broadcast %38 : vector<1x128xi1> to vector<2x128xi1>
      %40 = arith.select %39, %36, %37 : vector<2x128xi1>, vector<2x128xf32>
      %c0_10 = arith.constant 0 : index
      %c0_11 = arith.constant 0 : index
      %41 = vector.load %arg4[%c0_10, %c0_11] : memref<2x128xf32, #tpu.memory_space<vmem>>, vector<2x128xf32>
      tpu.vector_store %arg4[%c0_10, %c0_11], %40 {strides = array<i32>} : memref<2x128xf32, #tpu.memory_space<vmem>>, vector<2x128xf32>,
    } else {
    }
    %c0 = arith.constant 0 : index
    %c0_1 = arith.constant 0 : index
    %c0_2 = arith.constant 0 : index
    %3 = vector.load %arg2[%c0, %c0_1, %c0_2] : memref<1x2x128xf32, #tpu.memory_space<vmem>>, vector<1x2x128xf32>
    %4 = vector.shape_cast %3 : vector<1x2x128xf32> to vector<2x128xf32>
    %c0_3 = arith.constant 0 : index
    %c0_4 = arith.constant 0 : index
    %5 = vector.load %arg4[%c0_3, %c0_4] : memref<2x128xf32, #tpu.memory_space<vmem>>, vector<2x128xf32>
    %6 = arith.addf %4, %5 : vector<2x128xf32>
    %c0_5 = arith.constant 0 : index
    %c0_6 = arith.constant 0 : index
    %c0_7 = arith.constant 0 : index
    %7 = vector.load %arg3[%c0_5, %c0_6, %c0_7] : memref<1x2x128xf32, #tpu.memory_space<vmem>>, vector<1x2x128xf32>
    %8 = vector.shape_cast %7 : vector<1x2x128xf32> to vector<2x128xf32>
    %9 = vector.shape_cast %6 : vector<2x128xf32> to vector<1x2x128xf32>
    tpu.vector_store %arg3[%c0_5, %c0_6, %c0_7], %9 {strides = array<i32>} : memref<1x2x128xf32, #tpu.memory_space<vmem>>, vector<1x2x128xf32>,
    return
  }
  func.func @transform_0(%arg0: i32, %arg1: i32) -> (i32, i32, i32) {
    %c0_i32 = arith.constant 0 : i32
    %c0_i32_0 = arith.constant 0 : i32
    return %arg1, %arg0, %c0_i32 : i32, i32, i32
  }
  func.func @transform_1(%arg0: i32, %arg1: i32) -> (i32, i32, i32) {
    %c0_i32 = arith.constant 0 : i32
    %c0_i32_0 = arith.constant 0 : i32
    return %arg1, %arg0, %c0_i32 : i32, i32, i32
  }
}

</mosaic_0001>

<llo_original>
// kernel: tpu_custom_call.1
$region0: #{tpu_custom_call.1}
  #allocation0 [shape = 'u32[]', space=smem, size = 0x4, offset = 0x4, fixed_abs, tag = 'smem constant byte address 0x4 - core index']
  #allocation1 [shape = 'u32[72,128]{1,0:T(1,128)}', space=vmem, size = 0x9000, scoped, tag = 'internal scratch']
  #allocation2 [shape = 'f32[2,128]{1,0:T(2,128)}', space=vmem, size = 0x400, scoped, tag = 'scratch operand']
  %s0 = inlined_call_operand.hbm [shape: f32[2,2,128], index: 0, kind: input, shape index: {}]
  %s1 = inlined_call_operand.hbm [shape: f32[2,2,128], index: 1, kind: output, shape index: {}]
  %s2 = sld [smem:[#allocation0]]
  $region45: #{tpu_custom_call.1} parent=0
    _
  %s4 = ssub.s32 1, %s2
  %s5 = scalar_select 0, %s4, %s2
  $region1: #{tpu_custom_call.1} parent=0
    #allocation3 [shape = 'u8[2048]{0}', space=vmem, size = 0x800, scoped, tag = 'input window, operand 0']
    #allocation4 [shape = 's32[2]{0}', space=sflag, size = 0x8, scoped, tag = 'scoped memory for tpu_custom_call.1']
    #allocation5 [shape = 's32[2]{0}', space=sflag, size = 0x8, scoped, tag = 'scoped memory for tpu_custom_call.1']
    #allocation6 [shape = 'u8[2048]{0}', space=vmem, size = 0x800, scoped, tag = 'output window, operand 0']
    %6 = vsyncpa [#allocation4], 0
    %s7 = scalar_lea.sflag [#allocation4], 1
    %8 = vsyncpa %s7, 0
    %9 = vsyncpa [#allocation5], 0
    %s10 = scalar_lea.sflag [#allocation5], 1
    %11 = vsyncpa %s10, 0
    loop: start=0, step=1, limit=4
    $region2: #{tpu_custom_call.1} parent=1 // loop_pre_header
      _
    $region3: #{tpu_custom_call.1} parent=1 // loop_header
      %s13 = sphi 0, %s17
      %p14 = scmp.ge.s32.totalorder %s13, 4
      %s20 = sphi 0, %s32
      %s21 = sphi 0, %s28
      %s22 = sphi 0, %s20
      %s23 = sphi 0, %s21
      %s24 = sphi 0, %s22
      %s25 = sphi 0, %s23
      %s37 = sphi 0, %s39
      %s40 = sphi 0, %s37
      %s41 = sphi 0, %s40
      %s57 = sphi 0, %s41
      %s65 = sphi 0, %s67
      %s68 = sphi 0, %s65
      %s69 = sphi 0, %s68
      %s85 = sphi 0, %s69
    $region4: #{tpu_custom_call.1} parent=1 // loop_header_branch
      %16 = sbr.rel (%p14) target = $region8
    $region5: #{tpu_custom_call.1} parent=1 // loop_body
      %s18 = ssub.s32 %s13, 1
      %s19 = ssub.s32 %s13, 2
      %s26 = sadd.s32 1, %s21
      %p27 = scmp.ge.s32.totalorder %s26, 2
      %s28 = scalar_select %p27, 0, %s26
      %s29 = sadd.s32 1, %s20
      %s30 = scalar_select %p27, %s29, %s20
      %p31 = scmp.ge.s32.totalorder %s30, 1
      %s32 = scalar_select %p31, 0, %s30
      %s33 = ssub.s32 %s21, %s28
      %s34 = ssub.s32 %s20, %s32
      %s35 = sor.u32 %s33, %s34
      %p36 = scmp.eq.s32.totalorder %s35, 0
      %s38 = sadd.s32 %s37, 1
      %s39 = scalar_select %p36, %s37, %s38
      %p42 = pneg %p36
      %p43 = scmp.eq.s32.totalorder %s13, 1
      %p44 = por %p42, %p43
      %p45 = scmp.ne.s32.totalorder %s37, %s40
      %p46 = scmp.eq.s32.totalorder %s13, 0
      %p47 = por %p45, %p46
      %p48 = scmp.ne.s32.totalorder %s37, %s40
      %p49 = scmp.eq.s32.totalorder %s18, 1
      %p50 = por %p48, %p49
      %p51 = scmp.ne.s32.totalorder %s40, %s41
      %p52 = scmp.eq.s32.totalorder %s18, 0
      %p53 = por %p51, %p52
      %p54 = scmp.ne.s32.totalorder %s40, %s41
      %p55 = scmp.eq.s32.totalorder %s19, 1
      %p56 = por %p54, %p55
      %p58 = scmp.ne.s32.totalorder %s41, %s57
      %p59 = scmp.eq.s32.totalorder %s19, 0
      %p60 = por %p58, %p59
      %s61 = ssub.s32 %s21, %s28
      %s62 = ssub.s32 %s20, %s32
      %s63 = sor.u32 %s61, %s62
      %p64 = scmp.eq.s32.totalorder %s63, 0
      %s66 = sadd.s32 %s65, 1
      %s67 = scalar_select %p64, %s65, %s66
      %p70 = pneg %p64
      %p71 = scmp.eq.s32.totalorder %s13, 1
      %p72 = por %p70, %p71
      %p73 = scmp.ne.s32.totalorder %s65, %s68
      %p74 = scmp.eq.s32.totalorder %s13, 0
      %p75 = por %p73, %p74
      %p76 = scmp.ne.s32.totalorder %s65, %s68
      %p77 = scmp.eq.s32.totalorder %s18, 1
      %p78 = por %p76, %p77
      %p79 = scmp.ne.s32.totalorder %s68, %s69
      %p80 = scmp.eq.s32.totalorder %s18, 0
      %p81 = por %p79, %p80
      %p82 = scmp.ne.s32.totalorder %s68, %s69
      %p83 = scmp.eq.s32.totalorder %s19, 1
      %p84 = por %p82, %p83
      %p86 = scmp.ne.s32.totalorder %s69, %s85
      %p87 = scmp.eq.s32.totalorder %s19, 0
      %p88 = por %p86, %p87
      %p89 = scmp.le.s32.totalorder 1, %s13
      %p90 = scmp.lt.s32.totalorder %s13, 3
      %p91 = pnand %p89, %p90
      %p92 = pneg %p91
      // Predicated region
      $region9: #{tpu_custom_call.1} parent=5 // pred_check
        _
      $region10: #{tpu_custom_call.1} parent=5 // pred_check_branch
        %94 = sbr.rel (%p91) target = $region12
      $region11: #{tpu_custom_call.1} parent=5 // pred_region
        %s95 = ssub.s32 %s13, 1
      $region12: #{tpu_custom_call.1} parent=5 // pred_fallthru
        _
      %p96 = scmp.lt.s32.totalorder %s13, 2
      // Predicated region
      $region13: #{tpu_custom_call.1} parent=5 // pred_check
        %p97 = pneg %p96
      $region14: #{tpu_custom_call.1} parent=5 // pred_check_branch
        %99 = sbr.rel (%p97) target = $region16
      $region15: #{tpu_custom_call.1} parent=5 // pred_region
        // Predicated region
        $region17: #{tpu_custom_call.1} parent=15 // pred_check
          %p100 = pneg %p47
        $region18: #{tpu_custom_call.1} parent=15 // pred_check_branch
          %102 = sbr.rel (%p100) target = $region20
        $region19: #{tpu_custom_call.1} parent=15 // pred_region
          %s103 = sand.u32 %s37, 1
          %s104 = scalar_lea.sflag [#allocation4], %s103
          %s105 = sand.u32 %s37, 1
          %s106 = smul.addr %s105, 2
          %s107 = scalar_lea.vmem [#allocation3], %s106
          %109 = vsyncadd %s104, 0
          %s110 = sadd.s32 %s20, %s21
          %s111 = smul.addr %s110, 2
          %s112 = scalar_lea.hbm %s0, %s111
          %s114 = sshll.u32 %s112, 4
          %s115 = int_to_ptr.hbm [resolvable:$true] %s114
          %s116 = sshll.u32 %s107, 4
          %s117 = int_to_ptr.vmem [resolvable:$true] %s116
          %119 = dma.hbm_to_vmem [thread:$0]  %s115, 32, %s117, %s104
        $region20: #{tpu_custom_call.1} parent=15 // pred_fallthru
          _
      $region16: #{tpu_custom_call.1} parent=5 // pred_fallthru
        _
      %p120 = scmp.le.s32.totalorder 1, %s13
      %p121 = scmp.lt.s32.totalorder %s13, 3
      %p122 = pnand %p120, %p121
      %p123 = pneg %p122
      // Predicated region
      $region21: #{tpu_custom_call.1} parent=5 // pred_check
        _
      $region22: #{tpu_custom_call.1} parent=5 // pred_check_branch
        %125 = sbr.rel (%p122) target = $region24
      $region23: #{tpu_custom_call.1} parent=5 // pred_region
        %s126 = ssub.s32 %s13, 1
        %s127 = sand.u32 %s40, 1
        %s128 = scalar_lea.sflag [#allocation4], %s127
        %s129 = sand.u32 %s40, 1
        %s130 = smul.addr %s129, 2
        %s131 = scalar_lea.vmem [#allocation3], %s130
        // Predicated region
        $region25: #{tpu_custom_call.1} parent=23 // pred_check
          %p132 = pneg %p53
        $region26: #{tpu_custom_call.1} parent=23 // pred_check_branch
          %134 = sbr.rel (%p132) target = $region28
        $region27: #{tpu_custom_call.1} parent=23 // pred_region
          %136 = dma.done %s128, 32
        $region28: #{tpu_custom_call.1} parent=23 // pred_fallthru
          _
        %s137 = sand.u32 %s40, 1
        %s138 = scalar_lea.sflag [#allocation4], %s137
        %s139 = sand.u32 %s40, 1
        %s140 = smul.addr %s139, 2
        %s141 = scalar_lea.vmem [#allocation3], %s140
        %p142 = pneg %p53
        %p143 = pneg %p50
        %p144 = pneg %p81
        %p145 = pneg %p78
        %s146 = sand.u32 %s68, 1
        %s147 = scalar_lea.sflag [#allocation5], %s146
        %s148 = sand.u32 %s68, 1
        %s149 = smul.addr %s148, 2
        %s150 = scalar_lea.vmem [#allocation6], %s149
        %p151 = scmp.eq.s32.totalorder %s23, 0
        // Predicated region
        $region29: #{tpu_custom_call.1} parent=23 // pred_check
          %p152 = pneg %p151
        $region30: #{tpu_custom_call.1} parent=23 // pred_check_branch
          %154 = sbr.rel (%p152) target = $region32
        $region31: #{tpu_custom_call.1} parent=23 // pred_region
          %s155 = smul.u32 %s22, 256
          %v156 = vlaneseq
          %v157 = vshrl.u32 %v156, 7
          %v158 = vlaneseq
          %v159 = vand.u32 %v158, 127
          %v160 = vmul.u32 %v157, 128
          %v161 = vstv %s155
          %v162 = vadd.s32 %v161, %v160
          %v163 = vadd.s32 %v162, %v159
          %v164 = vshra.s32 %v163, 5
          %v165 = vcvt.s32.f32 %v164
          %v166 = vand.u32 %v159, 31
          %v167 = vshra.s32 %v166, 1
          %v168 = vcvt.s32.f32 %v167
          %v169 = vmul.f32 %v168, -0.5756463
          %v170 = vmul.f32 %v169, 1.442695
          %v171 = vpow.pop %v170
          %v172 = vmul.f32 %v165, %v171
          %v173 = vand.u32 %v166, 1
          %vm174 = vcmp.eq.s32.totalorder %v173, 0
          %v175 = vand.u32 2147483647, %v172
          %vm176 = vcmp.le.f32.partialorder %v175, 0.7853982
          %vm177 = vcmp.lt.s32.totalorder %v172, 0
          %v178 = vand.u32 %v172, 2139095040
          %v179 = vshrl.u32 %v178, 23
          %v180 = vsub.s32 %v179, 127
          %v181 = vand.u32 2147483647, %v172
          %v182 = vand.u32 %v181, 8388607
          %v183 = vor.u32 %v182, 8388608
          %v184 = vsub.s32 0, %v183
          %v185 = vadd.s32 %v180, 1
          %vm186 = vcmp.gt.s32.totalorder %v185, 0
          %v187 = vsel %vm186, %v185, 0
          %v188 = vshrl.u32 %v187, 5
          %v189 = vand.u32 %v187, 31
          %v190 = vsub.s32 32, %v189
          %v191 = vshrl.u32 683565275, %v190
          %v192 = vshll.u32 683565275, %v189
          %v193 = vshrl.u32 2475754826, %v190
          %v194 = vor.u32 %v192, %v193
          %v195 = vshll.u32 2475754826, %v189
          %v196 = vshrl.u32 2131351028, %v190
          %v197 = vor.u32 %v195, %v196
          %v198 = vshll.u32 2131351028, %v189
          %v199 = vshrl.u32 2102212464, %v190
          %v200 = vor.u32 %v198, %v199
          %v201 = vshll.u32 2102212464, %v189
          %v202 = vshrl.u32 920167782, %v190
          %v203 = vor.u32 %v201, %v202
          %v204 = vshll.u32 920167782, %v189
          %v205 = vshrl.u32 1326507024, %v190
          %v206 = vor.u32 %v204, %v205
          %vm207 = vcmp.lt.s32.totalorder %v188, 1
          %vm208 = vcmp.lt.s32.totalorder %v188, 2
          %vm209 = vcmp.lt.s32.totalorder %v188, 3
          %vm210 = vcmp.lt.s32.totalorder %v188, 4
          %v211 = vsel %vm207, %v191, %v194
          %v212 = vsel %vm210, %v200, 2102212464
          %v213 = vsel %vm209, %v197, %v212
          %v214 = vsel %vm208, %v211, %v213
          %v215 = vsel %vm207, %v194, %v197
          %v216 = vsel %vm210, %v203, 920167782
          %v217 = vsel %vm209, %v200, %v216
          %v218 = vsel %vm208, %v215, %v217
          %v219 = vsel %vm207, %v197, %v200
          %v220 = vsel %vm210, %v206, 1326507024
          %v221 = vsel %vm209, %v203, %v220
          %v222 = vsel %vm208, %v219, %v221
          %v223 = vshll.u32 %v183, 8
          %v224 = vand.u32 %v223, 65535
          %v225 = vshrl.u32 %v223, 16
          %v226 = vand.u32 %v222, 65535
          %v227 = vshrl.u32 %v222, 16
          %v228 = vmul.u32 %v224, %v226
          %v229 = vmul.u32 %v224, %v227
          %v230 = vmul.u32 %v225, %v226
          %v231 = vmul.u32 %v225, %v227
          %v232 = vshll.u32 %v229, 16
          %v233 = vshrl.u32 %v229, 16
          %v234 = vshll.u32 %v230, 16
          %v235 = vshrl.u32 %v230, 16
          %vm236 = vc.u32 %v228, %v232
          %v237 = vsel %vm236, 1, 0
          %v238 = vadd.s32 %v228, %v232
          %v239 = vadd.s32 %v231, %v237
          %vm240 = vc.u32 %v238, %v234
          %v241 = vsel %vm240, 1, 0
          %v242 = vadd.s32 %v238, %v234
          %v243 = vadd.s32 %v239, %v241
          %v244 = vadd.s32 %v243, %v233
          %v245 = vadd.s32 %v244, %v235
          %v246 = vand.u32 %v223, 65535
          %v247 = vshrl.u32 %v223, 16
          %v248 = vand.u32 %v218, 65535
          %v249 = vshrl.u32 %v218, 16
          %v250 = vmul.u32 %v246, %v248
          %v251 = vmul.u32 %v246, %v249
          %v252 = vmul.u32 %v247, %v248
          %v253 = vmul.u32 %v247, %v249
          %v254 = vshll.u32 %v251, 16
          %v255 = vshrl.u32 %v251, 16
          %v256 = vshll.u32 %v252, 16
          %v257 = vshrl.u32 %v252, 16
          %vm258 = vc.u32 %v250, %v254
          %v259 = vsel %vm258, 1, 0
          %v260 = vadd.s32 %v250, %v254
          %v261 = vadd.s32 %v253, %v259
          %vm262 = vc.u32 %v260, %v256
          %v263 = vsel %vm262, 1, 0
          %v264 = vadd.s32 %v260, %v256
          %v265 = vadd.s32 %v261, %v263
          %v266 = vadd.s32 %v265, %v255
          %v267 = vadd.s32 %v266, %v257
          %v268 = vmul.u32 %v223, %v214
          %v269 = vadd.s32 %v245, %v264
          %vm270 = vc.u32 %v245, %v264
          %v271 = vadd.s32 %v267, 1
          %v272 = vsel %vm270, %v271, %v267
          %v273 = vadd.s32 %v268, %v272
          %v274 = vadd.s32 %v273, 536870912
          %v275 = vshrl.u32 %v274, 30
          %v276 = vshll.u32 %v275, 30
          %v277 = vsub.s32 %v273, %v276
          %vm278 = vcmp.lt.s32.totalorder %v277, 0
          %v279 = vsub.s32 0, %v277
          %v280 = vsel %vm278, %v279, %v277
          %v281 = vclz %v280
          %v282 = vsub.s32 %v281, 2
          %vm283 = vcmp.gt.s32.totalorder 0, %v282
          %v284 = vsel %vm283, 0, %v282
          %v285 = vsub.s32 32, %v284
          %v286 = vshll.u32 %v277, %v284
          %v287 = vshrl.u32 %v269, %v285
          %v288 = vor.u32 %v286, %v287
          %v289 = vsub.s32 4294967266, %v284
          %v290 = vadd.s32 %v289, 127
          %v291 = vshll.u32 %v290, 23
          %v292 = vor.u32 4788187, %v291
          %v293 = vand.u32 2147483647, %v292
          %v295 = vcvt.s32.f32 %v288
          %v296 = vmul.f32 %v295, %v293
          %v297 = vxor.u32 %v296, 2147483648
          %v298 = vsel %vm177, %v297, %v296
          %v299 = vsub.s32 4, %v275
          %v300 = vsel %vm177, %v299, %v275
          %v301 = vsel %vm176, %v172, %v298
          %v302 = vsel %vm176, 0, %v300
          %v303 = vmul.f32 %v301, %v301
          %v304 = vmul.f32 %v303, -0.001358992
          %v305 = vadd.f32 %v304, 0.041655596
          %v306 = vmul.f32 %v303, %v305
          %v307 = vadd.f32 %v306, -0.4999988
          %v308 = vmul.f32 %v303, %v307
          %v309 = vadd.f32 1.0, %v308
          %v310 = vmul.f32 %v301, %v301
          %v311 = vmul.f32 %v310, -0.00019511016
          %v312 = vadd.f32 %v311, 0.008332121
          %v313 = vmul.f32 %v310, %v312
          %v314 = vadd.f32 %v313, -0.16666654
          %v315 = vmul.f32 %v310, %v314
          %v316 = vadd.f32 %v315, 1.0
          %v317 = vmul.f32 %v316, %v301
          %vm318 = vweird.f32 %v172
          %v319 = vadd.s32 %v302, 3
          %v320 = vand.u32 %v319, 3
          %vm321 = vcmp.lt.s32.totalorder %v320, 2
          %vm322 = vcmp.eq.s32.totalorder %v320, 0
          %v323 = vxor.u32 %v317, 2147483648
          %v324 = vsel %vm322, %v309, %v323
          %vm325 = vcmp.eq.s32.totalorder %v320, 2
          %v326 = vxor.u32 %v309, 2147483648
          %v327 = vsel %vm325, %v326, %v317
          %v328 = vsel %vm321, %v324, %v327
          %v329 = vsel %vm318, nan, %v328
          %v330 = vand.u32 2147483647, %v172
          %vm331 = vcmp.le.f32.partialorder %v330, 0.7853982
          %vm332 = vcmp.lt.s32.totalorder %v172, 0
          %v333 = vand.u32 %v172, 2139095040
          %v334 = vshrl.u32 %v333, 23
          %v335 = vsub.s32 %v334, 127
          %v336 = vand.u32 2147483647, %v172
          %v337 = vand.u32 %v336, 8388607
          %v338 = vor.u32 %v337, 8388608
          %v339 = vsub.s32 0, %v338
          %v340 = vadd.s32 %v335, 1
          %vm341 = vcmp.gt.s32.totalorder %v340, 0
          %v342 = vsel %vm341, %v340, 0
          %v343 = vshrl.u32 %v342, 5
          %v344 = vand.u32 %v342, 31
          %v345 = vsub.s32 32, %v344
          %v346 = vshrl.u32 683565275, %v345
          %v347 = vshll.u32 683565275, %v344
          %v348 = vshrl.u32 2475754826, %v345
          %v349 = vor.u32 %v347, %v348
          %v350 = vshll.u32 2475754826, %v344
          %v351 = vshrl.u32 2131351028, %v345
          %v352 = vor.u32 %v350, %v351
          %v353 = vshll.u32 2131351028, %v344
          %v354 = vshrl.u32 2102212464, %v345
          %v355 = vor.u32 %v353, %v354
          %v356 = vshll.u32 2102212464, %v344
          %v357 = vshrl.u32 920167782, %v345
          %v358 = vor.u32 %v356, %v357
          %v359 = vshll.u32 920167782, %v344
          %v360 = vshrl.u32 1326507024, %v345
          %v361 = vor.u32 %v359, %v360
          %vm362 = vcmp.lt.s32.totalorder %v343, 1
          %vm363 = vcmp.lt.s32.totalorder %v343, 2
          %vm364 = vcmp.lt.s32.totalorder %v343, 3
          %vm365 = vcmp.lt.s32.totalorder %v343, 4
          %v366 = vsel %vm362, %v346, %v349
          %v367 = vsel %vm365, %v355, 2102212464
          %v368 = vsel %vm364, %v352, %v367
          %v369 = vsel %vm363, %v366, %v368
          %v370 = vsel %vm362, %v349, %v352
          %v371 = vsel %vm365, %v358, 920167782
          %v372 = vsel %vm364, %v355, %v371
          %v373 = vsel %vm363, %v370, %v372
          %v374 = vsel %vm362, %v352, %v355
          %v375 = vsel %vm365, %v361, 1326507024
          %v376 = vsel %vm364, %v358, %v375
          %v377 = vsel %vm363, %v374, %v376
          %v378 = vshll.u32 %v338, 8
          %v379 = vand.u32 %v378, 65535
          %v380 = vshrl.u32 %v378, 16
          %v381 = vand.u32 %v377, 65535
          %v382 = vshrl.u32 %v377, 16
          %v383 = vmul.u32 %v379, %v381
          %v384 = vmul.u32 %v379, %v382
          %v385 = vmul.u32 %v380, %v381
          %v386 = vmul.u32 %v380, %v382
          %v387 = vshll.u32 %v384, 16
          %v388 = vshrl.u32 %v384, 16
          %v389 = vshll.u32 %v385, 16
          %v390 = vshrl.u32 %v385, 16
          %vm391 = vc.u32 %v383, %v387
          %v392 = vsel %vm391, 1, 0
          %v393 = vadd.s32 %v383, %v387
          %v394 = vadd.s32 %v386, %v392
          %vm395 = vc.u32 %v393, %v389
          %v396 = vsel %vm395, 1, 0
          %v397 = vadd.s32 %v393, %v389
          %v398 = vadd.s32 %v394, %v396
          %v399 = vadd.s32 %v398, %v388
          %v400 = vadd.s32 %v399, %v390
          %v401 = vand.u32 %v378, 65535
          %v402 = vshrl.u32 %v378, 16
          %v403 = vand.u32 %v373, 65535
          %v404 = vshrl.u32 %v373, 16
          %v405 = vmul.u32 %v401, %v403
          %v406 = vmul.u32 %v401, %v404
          %v407 = vmul.u32 %v402, %v403
          %v408 = vmul.u32 %v402, %v404
          %v409 = vshll.u32 %v406, 16
          %v410 = vshrl.u32 %v406, 16
          %v411 = vshll.u32 %v407, 16
          %v412 = vshrl.u32 %v407, 16
          %vm413 = vc.u32 %v405, %v409
          %v414 = vsel %vm413, 1, 0
          %v415 = vadd.s32 %v405, %v409
          %v416 = vadd.s32 %v408, %v414
          %vm417 = vc.u32 %v415, %v411
          %v418 = vsel %vm417, 1, 0
          %v419 = vadd.s32 %v415, %v411
          %v420 = vadd.s32 %v416, %v418
          %v421 = vadd.s32 %v420, %v410
          %v422 = vadd.s32 %v421, %v412
          %v423 = vmul.u32 %v378, %v369
          %v424 = vadd.s32 %v400, %v419
          %vm425 = vc.u32 %v400, %v419
          %v426 = vadd.s32 %v422, 1
          %v427 = vsel %vm425, %v426, %v422
          %v428 = vadd.s32 %v423, %v427
          %v429 = vadd.s32 %v428, 536870912
          %v430 = vshrl.u32 %v429, 30
          %v431 = vshll.u32 %v430, 30
          %v432 = vsub.s32 %v428, %v431
          %vm433 = vcmp.lt.s32.totalorder %v432, 0
          %v434 = vsub.s32 0, %v432
          %v435 = vsel %vm433, %v434, %v432
          %v436 = vclz %v435
          %v437 = vsub.s32 %v436, 2
          %vm438 = vcmp.gt.s32.totalorder 0, %v437
          %v439 = vsel %vm438, 0, %v437
          %v440 = vsub.s32 32, %v439
          %v441 = vshll.u32 %v432, %v439
          %v442 = vshrl.u32 %v424, %v440
          %v443 = vor.u32 %v441, %v442
          %v444 = vsub.s32 4294967266, %v439
          %v445 = vadd.s32 %v444, 127
          %v446 = vshll.u32 %v445, 23
          %v447 = vor.u32 4788187, %v446
          %v448 = vand.u32 2147483647, %v447
          %v450 = vcvt.s32.f32 %v443
          %v451 = vmul.f32 %v450, %v448
          %v452 = vxor.u32 %v451, 2147483648
          %v453 = vsel %vm332, %v452, %v451
          %v454 = vsub.s32 4, %v430
          %v455 = vsel %vm332, %v454, %v430
          %v456 = vsel %vm331, %v172, %v453
          %v457 = vsel %vm331, 0, %v455
          %v458 = vmul.f32 %v456, %v456
          %v459 = vmul.f32 %v458, -0.001358992
          %v460 = vadd.f32 %v459, 0.041655596
          %v461 = vmul.f32 %v458, %v460
          %v462 = vadd.f32 %v461, -0.4999988
          %v463 = vmul.f32 %v458, %v462
          %v464 = vadd.f32 1.0, %v463
          %v465 = vmul.f32 %v456, %v456
          %v466 = vmul.f32 %v465, -0.00019511016
          %v467 = vadd.f32 %v466, 0.008332121
          %v468 = vmul.f32 %v465, %v467
          %v469 = vadd.f32 %v468, -0.16666654
          %v470 = vmul.f32 %v465, %v469
          %v471 = vadd.f32 %v470, 1.0
          %v472 = vmul.f32 %v471, %v456
          %vm473 = vweird.f32 %v172
          %v474 = vand.u32 %v457, 3
          %vm475 = vcmp.lt.s32.totalorder %v474, 2
          %vm476 = vcmp.eq.s32.totalorder %v474, 0
          %v477 = vxor.u32 %v472, 2147483648
          %v478 = vsel %vm476, %v464, %v477
          %vm479 = vcmp.eq.s32.totalorder %v474, 2
          %v480 = vxor.u32 %v464, 2147483648
          %v481 = vsel %vm479, %v480, %v472
          %v482 = vsel %vm475, %v478, %v481
          %v483 = vsel %vm473, nan, %v482
          %v484 = vsel %vm174, 1, 0
          %vm485 = vcmp.eq.s32.totalorder %v484, 1
          %v486 = vsel %vm485, %v329, %v483
          %487 = vst [vmem:[#allocation2] sm:$0x3] %v486
        $region32: #{tpu_custom_call.1} parent=23 // pred_fallthru
          _
        %v488 = vld [vmem:[%s131] sm:$0x3]
        %v489 = vld [vmem:[#allocation2] sm:$0x3]
        %v490 = vadd.f32 %v488, %v489
        %491 = vst [vmem:[%s150] sm:$0x3] %v490
        %s492 = sand.u32 %s68, 1
        %s493 = scalar_lea.sflag [#allocation5], %s492
        %s494 = sand.u32 %s68, 1
        %s495 = smul.addr %s494, 2
        %s496 = scalar_lea.vmem [#allocation6], %s495
        // Predicated region
        $region33: #{tpu_custom_call.1} parent=23 // pred_check
          %p497 = pneg %p78
        $region34: #{tpu_custom_call.1} parent=23 // pred_check_branch
          %499 = sbr.rel (%p497) target = $region36
        $region35: #{tpu_custom_call.1} parent=23 // pred_region
          %501 = vsyncadd %s493, 0
          %s502 = sadd.s32 %s22, %s23
          %s503 = smul.addr %s502, 2
          %s504 = scalar_lea.hbm %s1, %s503
          %s506 = sshll.u32 %s496, 4
          %s507 = int_to_ptr.vmem [resolvable:$true] %s506
          %s508 = sshll.u32 %s504, 4
          %s509 = int_to_ptr.hbm [resolvable:$true] %s508
          %511 = dma.vmem_to_hbm [thread:$0]  %s507, 32, %s509, %s493
        $region36: #{tpu_custom_call.1} parent=23 // pred_fallthru
          _
      $region24: #{tpu_custom_call.1} parent=5 // pred_fallthru
        _
      %p512 = scmp.le.s32.totalorder 2, %s13
      // Predicated region
      $region37: #{tpu_custom_call.1} parent=5 // pred_check
        %p513 = pneg %p512
      $region38: #{tpu_custom_call.1} parent=5 // pred_check_branch
        %515 = sbr.rel (%p513) target = $region40
      $region39: #{tpu_custom_call.1} parent=5 // pred_region
        %s516 = ssub.s32 %s13, 2
        // Predicated region
        $region41: #{tpu_custom_call.1} parent=39 // pred_check
          %p517 = pneg %p84
        $region42: #{tpu_custom_call.1} parent=39 // pred_check_branch
          %519 = sbr.rel (%p517) target = $region44
        $region43: #{tpu_custom_call.1} parent=39 // pred_region
          %s520 = sand.u32 %s69, 1
          %s521 = scalar_lea.sflag [#allocation5], %s520
          %s522 = sand.u32 %s69, 1
          %s523 = smul.addr %s522, 2
          %s524 = scalar_lea.vmem [#allocation6], %s523
          %526 = dma.done %s521, 32
        $region44: #{tpu_custom_call.1} parent=39 // pred_fallthru
          _
      $region40: #{tpu_custom_call.1} parent=5 // pred_fallthru
        _
    $region6: #{tpu_custom_call.1} parent=1 // loop_footer
      %s17 = sadd.s32 1, %s13
    $region7: #{tpu_custom_call.1} parent=1 // loop_footer_branch
      %12 = sbr.rel target = $region3
    $region8: #{tpu_custom_call.1} parent=1 // loop_exit
      _
    %527 = vsyncpa [#allocation4], 1
    %s528 = scalar_lea.sflag [#allocation4], 1
    %529 = vsyncpa %s528, 1
    %530 = vsyncpa [#allocation5], 1
    %s531 = scalar_lea.sflag [#allocation5], 1
    %532 = vsyncpa %s531, 1

</llo_original>
